<compile_context>
chip_gen: v7x
topology: tpu7x:2x2x1
jax: 0.10.0
libtpu: 0.0.40
codegen_flags: <defaults>
</compile_context>

<pallas_src>
import functools

import jax
import jax.numpy as jnp
from jax.experimental import pallas as pl
from jax.experimental.pallas import tpu as pltpu


_VMEM_LIMIT_BYTES = 48 * 1024 * 1024


# ---------------------------------------------------------------------------
# Shared spatial accumulation (running f32 sum / max over lane tiles)
# ---------------------------------------------------------------------------
def _accum_tile(x, k, nk, sum_acc, max_acc, *, true_s, tile_s, need_mask):
    """Accumulate one (Cb, TS) spatial tile into (1, Cb) f32 running sum/max."""

    @pl.when(k == 0)
    def _init():
        sum_acc[...] = jnp.zeros_like(sum_acc)
        max_acc[...] = jnp.full_like(max_acc, -jnp.inf)

    def _acc(x_sum, x_max):
        # f32 accumulation fused into the reductions (no f32 copy of the tile).
        sum_acc[...] += jnp.sum(x_sum, axis=1, dtype=jnp.float32)[None, :]
        max_acc[...] = jnp.maximum(
            max_acc[...], jnp.max(x_max, axis=1).astype(jnp.float32)[None, :])

    if need_mask:
        # Only the LAST spatial tile hangs over the true extent S (grid is
        # cdiv(S, TS); Pallas serves the partial block with unspecified data in
        # the out-of-bounds lanes).  Interior tiles take the cheap unmasked
        # path; the last tile SELECTS pad lanes to 0 / -inf, so even NaN
        # garbage in the OOB lanes cannot leak through.
        # NOTE: the -inf fill assumes floating-point activations.
        @pl.when(k < nk - 1)
        def _interior():
            _acc(x, x)

        @pl.when(k == nk - 1)
        def _last():
            col = jax.lax.broadcasted_iota(jnp.int32, (1, tile_s), 1) + k * tile_s
            valid = col < true_s                                  # (1, TS) lane mask
            _acc(jnp.where(valid, x, jnp.zeros((), x.dtype)),
                 jnp.where(valid, x, jnp.asarray(-jnp.inf, x.dtype)))
    else:
        _acc(x, x)


# ---------------------------------------------------------------------------
# Kernel A (default): streaming pool + fused shared-MLP + sigmoid
# ---------------------------------------------------------------------------
def _fused_kernel(x_ref, w1t_ref, w2t_ref, o_ref, sum_acc, max_acc, *,
                  true_s, tile_s, need_mask):
    # x_ref:  (1, C, TS)   one spatial tile of one batch element
    # w1t:    (C, Cr)      transpose of Conv3d #1 weight, VMEM-resident
    # w2t:    (Cr, C)      transpose of Conv3d #2 weight, VMEM-resident
    # o_ref:  (1, 1, C)    sigmoid channel gate (written only at last k)
    k = pl.program_id(1)
    nk = pl.num_programs(1)

    _accum_tile(x_ref[0], k, nk, sum_acc, max_acc,
                true_s=true_s, tile_s=tile_s, need_mask=need_mask)

    @pl.when(k == nk - 1)
    def _finalize():
        avg = sum_acc[...] * (1.0 / float(true_s))                # (1, C) f32
        mx = max_acc[...]                                         # (1, C) f32
        pm = jnp.concatenate([avg, mx], axis=0)                   # (2, C)
        h = jnp.maximum(
            jnp.dot(pm, w1t_ref[...], preferred_element_type=jnp.float32), 0.0)
        o2 = jnp.dot(h, w2t_ref[...], preferred_element_type=jnp.float32)  # (2, C)
        gate = jax.nn.sigmoid(o2[0:1, :] + o2[1:2, :])            # (1, C)
        o_ref[0] = gate.astype(o_ref.dtype)


# ---------------------------------------------------------------------------
# Kernel B (small-N, large-C): channel-tiled pooling + separate batched MLP
# ---------------------------------------------------------------------------
def _pool_kernel(x_ref, o_ref, sum_acc, max_acc, *, true_s, tile_s, need_mask):
    # x_ref:   (1, TC, TS)  one (channel, spatial) tile of one batch element
    # o_ref:   (1, 2, TC)   [mean, max] (written only at last k)
    k = pl.program_id(2)
    nk = pl.num_programs(2)

    _accum_tile(x_ref[0], k, nk, sum_acc, max_acc,
                true_s=true_s, tile_s=tile_s, need_mask=need_mask)

    @pl.when(k == nk - 1)
    def _finalize():
        o_ref[0, pl.ds(0, 1), :] = (
            sum_acc[...] * (1.0 / float(true_s))).astype(o_ref.dtype)
        o_ref[0, pl.ds(1, 1), :] = max_acc[...].astype(o_ref.dtype)


def _mlp_kernel(p_ref, w1t_ref, w2t_ref, o_ref):
    # p_ref: (N, 2, C) f32 pooled [mean, max];  o_ref: (N, C) gate.
    # Batched: one (2N,C)@(C,Cr) and one (2N,Cr)@(Cr,C) instead of 4 matmuls.
    p = p_ref[...]
    n = p.shape[0]
    avg = p[:, 0, :]                                              # (N, C)
    mx = p[:, 1, :]                                               # (N, C)
    pm = jnp.concatenate([avg, mx], axis=0)                       # (2N, C)
    h = jnp.maximum(
        jnp.dot(pm, w1t_ref[...], preferred_element_type=jnp.float32), 0.0)
    o2 = jnp.dot(h, w2t_ref[...], preferred_element_type=jnp.float32)  # (2N, C)
    o_ref[...] = jax.nn.sigmoid(o2[:n] + o2[n:]).astype(o_ref.dtype)


# ---------------------------------------------------------------------------
# Tiling helpers / wrapper
# ---------------------------------------------------------------------------
def _choose_spatial_tile(S, c_block, itemsize, budget_bytes):
    """Lane tile TS: whole S if it fits the budget, else a multiple of 128 with
    each per-channel DMA row >= ~2 KiB contiguous (descriptor-bound otherwise)."""
    if c_block * S * itemsize <= budget_bytes:
        return int(S)
    ts = (budget_bytes // (c_block * itemsize)) // 128 * 128
    min_ts = ((2048 // itemsize + 127) // 128) * 128              # 512 f32 / 1024 bf16
    ts = max(ts, min_ts, 128)
    return int(min(ts, S))


def channel_attention(x, w1, w2, *, spatial_tile_bytes=8 * 1024 * 1024):
    """x: (N, C, D, H, W).  w1: (Cr, C), w2: (C, Cr) (1x1x1 Conv3d weights, no bias).

    Returns the sigmoid channel gate of shape (N, C, 1, 1, 1), dtype of x.
    """
    N, C, D, H, W = x.shape
    Cr = w1.shape[0]
    S = D * H * W
    x_flat = x.reshape(N, C, S)
    itemsize = x_flat.dtype.itemsize

    w1t = jnp.transpose(w1).astype(jnp.float32)                   # (C, Cr)
    w2t = jnp.transpose(w2).astype(jnp.float32)                   # (Cr, C)

    # Channel tiling only when batch alone can't keep both v7x TensorCores busy
    # and C supports lane-aligned (multiple-of-128) output blocks.
    tc = C // 2 if (N < 2 and C % 256 == 0) else C

    ts = _choose_spatial_tile(S, tc, itemsize, spatial_tile_bytes)
    k_tiles = pl.cdiv(S, ts)
    need_mask = (S % ts) != 0

    if tc == C:
        # Fully fused path: pooling + shared MLP + sigmoid in one pallas_call.
        kernel = functools.partial(
            _fused_kernel, true_s=S, tile_s=ts, need_mask=need_mask)
        gate = pl.pallas_call(
            kernel,
            out_shape=jax.ShapeDtypeStruct((N, 1, C), x.dtype),
            grid_spec=pltpu.PrefetchScalarGridSpec(
                num_scalar_prefetch=0,
                grid=(N, k_tiles),
                in_specs=[
                    pl.BlockSpec((1, C, ts), lambda n, k: (n, 0, k)),
                    pl.BlockSpec((C, Cr), lambda n, k: (0, 0)),
                    pl.BlockSpec((Cr, C), lambda n, k: (0, 0)),
                ],
                out_specs=pl.BlockSpec((1, 1, C), lambda n, k: (n, 0, 0)),
                scratch_shapes=[pltpu.VMEM((1, C), jnp.float32),
                                pltpu.VMEM((1, C), jnp.float32)],
            ),
            compiler_params=pltpu.CompilerParams(
                dimension_semantics=("parallel", "arbitrary"),
                vmem_limit_bytes=_VMEM_LIMIT_BYTES),
            cost_estimate=pl.CostEstimate(
                flops=2 * N * C * S + 8 * N * C * Cr,
                transcendentals=N * C,
                bytes_accessed=N * C * S * itemsize + 2 * C * Cr * 4
                + N * C * itemsize),
        )(x_flat, w1t, w2t)
        return gate.reshape(N, C, 1, 1, 1)

    # Channel-tiled path (N == 1, large C): both cores stream half the channels.
    kernel = functools.partial(
        _pool_kernel, true_s=S, tile_s=ts, need_mask=need_mask)
    pooled = pl.pallas_call(
        kernel,
        out_shape=jax.ShapeDtypeStruct((N, 2, C), jnp.float32),
        grid_spec=pltpu.PrefetchScalarGridSpec(
            num_scalar_prefetch=0,
            grid=(N, C // tc, k_tiles),
            in_specs=[pl.BlockSpec((1, tc, ts), lambda n, c, k: (n, c, k))],
            out_specs=pl.BlockSpec((1, 2, tc), lambda n, c, k: (n, 0, c)),
            scratch_shapes=[pltpu.VMEM((1, tc), jnp.float32),
                            pltpu.VMEM((1, tc), jnp.float32)],
        ),
        compiler_params=pltpu.CompilerParams(
            dimension_semantics=("parallel", "parallel", "arbitrary"),
            vmem_limit_bytes=_VMEM_LIMIT_BYTES),
        cost_estimate=pl.CostEstimate(
            flops=2 * N * C * S,
            transcendentals=0,
            bytes_accessed=N * C * S * itemsize + N * 2 * C * 4),
    )(x_flat)

    gate = pl.pallas_call(
        _mlp_kernel,
        out_shape=jax.ShapeDtypeStruct((N, C), x.dtype),
        cost_estimate=pl.CostEstimate(
            flops=8 * N * C * Cr,
            transcendentals=N * C,
            bytes_accessed=(N * 2 * C + 2 * C * Cr + N * C) * 4),
    )(pooled, w1t, w2t)
    return gate.reshape(N, C, 1, 1, 1)


def _reference(x, w1, w2):
    # Pure-JAX reference mirroring the PyTorch module.
    avg = jnp.mean(x, axis=(2, 3, 4))                             # (N, C)
    mx = jnp.max(x, axis=(2, 3, 4))                               # (N, C)

    def mlp(v):
        h = jnp.maximum(v @ w1.T, 0.0)
        return h @ w2.T

    out = jax.nn.sigmoid(mlp(avg) + mlp(mx))
    return out.reshape(*out.shape, 1, 1, 1)


if __name__ == "__main__":
    key = jax.random.PRNGKey(0)
    kx, k1, k2, kx2, kx3, kx4, k3, k4 = jax.random.split(key, 8)

    # Small shapes consistent with the module: 5-D NCDHW input for Conv3d/Pool3d.
    N, C, ratio = 2, 8, 4
    Cr = C // ratio
    w1 = jax.random.normal(k1, (Cr, C), dtype=jnp.float32) * (1.0 / jnp.sqrt(C))
    w2 = jax.random.normal(k2, (C, Cr), dtype=jnp.float32) * (1.0 / jnp.sqrt(Cr))

    # 1) Fused path, whole spatial extent in one tile.
    x = jax.random.normal(kx, (N, C, 4, 8, 8), dtype=jnp.float32)
    out = jax.block_until_ready(channel_attention(x, w1, w2))
    assert out.shape == (N, C, 1, 1, 1)
    assert jnp.allclose(out, _reference(x, w1, w2), atol=1e-5, rtol=1e-5)

    # 2) Fused path, forced multi-tile spatial reduction, exact multiple (no mask).
    x2 = jax.random.normal(kx2, (N, C, 8, 16, 8), dtype=jnp.float32)   # S = 1024
    out2 = jax.block_until_ready(
        channel_attention(x2, w1, w2, spatial_tile_bytes=4 * 1024))
    assert jnp.allclose(out2, _reference(x2, w1, w2), atol=1e-5, rtol=1e-5)

    # 3) Fused path, ragged S (last-tile-only lane mask, no host-side padding).
    x3 = jax.random.normal(kx3, (N, C, 8, 10, 8), dtype=jnp.float32)   # S = 640
    out3 = jax.block_until_ready(
        channel_attention(x3, w1, w2, spatial_tile_bytes=4 * 1024))
    assert jnp.allclose(out3, _reference(x3, w1, w2), atol=1e-5, rtol=1e-5)

    # 4) Channel-tiled path (N=1, C=256): parallel channel axis + batched MLP kernel.
    C4, Cr4 = 256, 256 // ratio
    w1b = jax.random.normal(k3, (Cr4, C4), dtype=jnp.float32) * (1.0 / jnp.sqrt(C4))
    w2b = jax.random.normal(k4, (C4, Cr4), dtype=jnp.float32) * (1.0 / jnp.sqrt(Cr4))
    x4 = jax.random.normal(kx4, (1, C4, 4, 4, 8), dtype=jnp.float32)
    out4 = jax.block_until_ready(channel_attention(x4, w1b, w2b))
    assert out4.shape == (1, C4, 1, 1, 1)
    assert jnp.allclose(out4, _reference(x4, w1b, w2b), atol=1e-5, rtol=1e-5)

    print("KERNEL_OK")
</pallas_src>

<mosaic_0001>
module attributes {stable_mosaic.version = 11 : i64} {
  func.func @_fused_kernel(%arg0: i32, %arg1: i32, %arg2: memref<1x8x256xf32, #tpu.memory_space<vmem>>, %arg3: memref<8x2xf32, #tpu.memory_space<vmem>>, %arg4: memref<2x8xf32, #tpu.memory_space<vmem>>, %arg5: memref<1x1x8xf32, #tpu.memory_space<vmem>>, %arg6: memref<1x8xf32, #tpu.memory_space<vmem>>, %arg7: memref<1x8xf32, #tpu.memory_space<vmem>>) attributes {dimension_semantics = [#tpu.dimension_semantics<parallel>, #tpu.dimension_semantics<arbitrary>], iteration_bounds = array<i64: 2, 1>, scalar_prefetch = 0 : i64, scratch_operands = 2 : i64, tpu.core_type = #tpu.core_type<tc>, window_params = [{transform_indices = @transform_0, window_bounds = array<i64: 1, 8, 256>}, {pipeline_mode = #tpu.pipeline_mode<synchronous>, transform_indices = @transform_1, window_bounds = array<i64: 8, 2>}, {pipeline_mode = #tpu.pipeline_mode<synchronous>, transform_indices = @transform_2, window_bounds = array<i64: 2, 8>}, {transform_indices = @transform_3, window_bounds = array<i64: 1, 1, 8>}]} {
    %c0 = arith.constant 0 : index
    %c0_0 = arith.constant 0 : index
    %c0_1 = arith.constant 0 : index
    %0 = vector.load %arg2[%c0, %c0_0, %c0_1] : memref<1x8x256xf32, #tpu.memory_space<vmem>>, vector<1x8x256xf32>
    %1 = vector.shape_cast %0 : vector<1x8x256xf32> to vector<8x256xf32>
    %c0_i32 = arith.constant 0 : i32
    %2 = arith.cmpi eq, %arg1, %c0_i32 : i32
    %3 = arith.extui %2 : i1 to i32
    %c0_i32_2 = arith.constant 0 : i32
    %4 = arith.cmpi ne, %3, %c0_i32_2 : i32
    scf.if %4 {
      %cst_14 = arith.constant 0.000000e+00 : f32
      %18 = vector.broadcast %cst_14 : f32 to vector<1x8xf32>
      %c0_15 = arith.constant 0 : index
      %c0_16 = arith.constant 0 : index
      %19 = vector.load %arg6[%c0_15, %c0_16] : memref<1x8xf32, #tpu.memory_space<vmem>>, vector<1x8xf32>
      tpu.vector_store %arg6[%c0_15, %c0_16], %18 {strides = array<i32>} : memref<1x8xf32, #tpu.memory_space<vmem>>, vector<1x8xf32>,
      %cst_17 = arith.constant 0xFF800000 : f32
      %20 = vector.broadcast %cst_17 : f32 to vector<1x8xf32>
      %c0_18 = arith.constant 0 : index
      %c0_19 = arith.constant 0 : index
      %21 = vector.load %arg7[%c0_18, %c0_19] : memref<1x8xf32, #tpu.memory_space<vmem>>, vector<1x8xf32>
      tpu.vector_store %arg7[%c0_18, %c0_19], %20 {strides = array<i32>} : memref<1x8xf32, #tpu.memory_space<vmem>>, vector<1x8xf32>,
    } else {
    }
    %c0_3 = arith.constant 0 : index
    %c0_4 = arith.constant 0 : index
    %5 = vector.load %arg6[%c0_3, %c0_4] : memref<1x8xf32, #tpu.memory_space<vmem>>, vector<1x8xf32>
    %cst = arith.constant dense<0.000000e+00> : vector<8xf32>
    %6 = vector.multi_reduction <add>, %1, %cst [1] : vector<8x256xf32> to vector<8xf32>
    %7 = vector.shape_cast %6 : vector<8xf32> to vector<1x8xf32>
    %8 = arith.addf %5, %7 : vector<1x8xf32>
    %c0_5 = arith.constant 0 : index
    %c0_6 = arith.constant 0 : index
    %9 = vector.load %arg6[%c0_5, %c0_6] : memref<1x8xf32, #tpu.memory_space<vmem>>, vector<1x8xf32>
    tpu.vector_store %arg6[%c0_5, %c0_6], %8 {strides = array<i32>} : memref<1x8xf32, #tpu.memory_space<vmem>>, vector<1x8xf32>,
    %c0_7 = arith.constant 0 : index
    %c0_8 = arith.constant 0 : index
    %10 = vector.load %arg7[%c0_7, %c0_8] : memref<1x8xf32, #tpu.memory_space<vmem>>, vector<1x8xf32>
    %cst_9 = arith.constant dense<0xFF800000> : vector<8xf32>
    %11 = vector.multi_reduction <maximumf>, %1, %cst_9 [1] : vector<8x256xf32> to vector<8xf32>
    %12 = vector.shape_cast %11 : vector<8xf32> to vector<1x8xf32>
    %13 = arith.maximumf %10, %12 : vector<1x8xf32>
    %c0_10 = arith.constant 0 : index
    %c0_11 = arith.constant 0 : index
    %14 = vector.load %arg7[%c0_10, %c0_11] : memref<1x8xf32, #tpu.memory_space<vmem>>, vector<1x8xf32>
    tpu.vector_store %arg7[%c0_10, %c0_11], %13 {strides = array<i32>} : memref<1x8xf32, #tpu.memory_space<vmem>>, vector<1x8xf32>,
    %c0_i32_12 = arith.constant 0 : i32
    %15 = arith.cmpi eq, %arg1, %c0_i32_12 : i32
    %16 = arith.extui %15 : i1 to i32
    %c0_i32_13 = arith.constant 0 : i32
    %17 = arith.cmpi ne, %16, %c0_i32_13 : i32
    scf.if %17 {
      %c0_14 = arith.constant 0 : index
      %c0_15 = arith.constant 0 : index
      %18 = vector.load %arg6[%c0_14, %c0_15] : memref<1x8xf32, #tpu.memory_space<vmem>>, vector<1x8xf32>
      %cst_16 = arith.constant 3.906250e-03 : f32
      %19 = vector.broadcast %cst_16 : f32 to vector<1x8xf32>
      %20 = arith.mulf %18, %19 : vector<1x8xf32>
      %c0_17 = arith.constant 0 : index
      %c0_18 = arith.constant 0 : index
      %21 = vector.load %arg7[%c0_17, %c0_18] : memref<1x8xf32, #tpu.memory_space<vmem>>, vector<1x8xf32>
      %22 = tpu.concatenate %20, %21 in 0 : vector<1x8xf32>, vector<1x8xf32> -> vector<2x8xf32>
      %c0_19 = arith.constant 0 : index
      %c0_20 = arith.constant 0 : index
      %23 = vector.load %arg3[%c0_19, %c0_20] : memref<8x2xf32, #tpu.memory_space<vmem>>, vector<8x2xf32>
      %cst_21 = arith.constant dense<0.000000e+00> : vector<2x2xf32>
      %24 = tpu.matmul %22, %23, %cst_21 {dimension_numbers = #tpu.dot_dimension_numbers<[1], [0], [0], [1], [0, 0, 1, 1], [], []>} : vector<2x8xf32>, vector<8x2xf32>, vector<2x2xf32> -> vector<2x2xf32>
      %cst_22 = arith.constant 0.000000e+00 : f32
      %25 = vector.broadcast %cst_22 : f32 to vector<2x2xf32>
      %26 = arith.maximumf %24, %25 : vector<2x2xf32>
      %c0_23 = arith.constant 0 : index
      %c0_24 = arith.constant 0 : index
      %27 = vector.load %arg4[%c0_23, %c0_24] : memref<2x8xf32, #tpu.memory_space<vmem>>, vector<2x8xf32>
      %cst_25 = arith.constant dense<0.000000e+00> : vector<2x8xf32>
      %28 = tpu.matmul %26, %27, %cst_25 {dimension_numbers = #tpu.dot_dimension_numbers<[1], [0], [0], [1], [0, 0, 1, 1], [], []>} : vector<2x2xf32>, vector<2x8xf32>, vector<2x8xf32> -> vector<2x8xf32>
      %29 = vector.extract_strided_slice %28 {offsets = [0, 0], sizes = [1, 8], strides = [1, 1]} : vector<2x8xf32> to vector<1x8xf32>
      %30 = vector.extract_strided_slice %28 {offsets = [1, 0], sizes = [1, 8], strides = [1, 1]} : vector<2x8xf32> to vector<1x8xf32>
      %31 = arith.addf %29, %30 : vector<1x8xf32>
      %32 = arith.negf %31 : vector<1x8xf32>
      %33 = math.exp %32 : vector<1x8xf32>
      %cst_26 = arith.constant 1.000000e+00 : f32
      %34 = vector.broadcast %cst_26 : f32 to vector<1x8xf32>
      %35 = arith.addf %34, %33 : vector<1x8xf32>
      %36 = arith.divf %34, %35 : vector<1x8xf32>
      %c0_27 = arith.constant 0 : index
      %c0_28 = arith.constant 0 : index
      %c0_29 = arith.constant 0 : index
      %37 = vector.load %arg5[%c0_27, %c0_28, %c0_29] : memref<1x1x8xf32, #tpu.memory_space<vmem>>, vector<1x1x8xf32>
      %38 = vector.shape_cast %37 : vector<1x1x8xf32> to vector<1x8xf32>
      %39 = vector.shape_cast %36 : vector<1x8xf32> to vector<1x1x8xf32>
      tpu.vector_store %arg5[%c0_27, %c0_28, %c0_29], %39 {strides = array<i32>} : memref<1x1x8xf32, #tpu.memory_space<vmem>>, vector<1x1x8xf32>,
    } else {
    }
    return
  }
  func.func @transform_0(%arg0: i32, %arg1: i32) -> (i32, i32, i32) {
    %c0_i32 = arith.constant 0 : i32
    %c0_i32_0 = arith.constant 0 : i32
    return %arg0, %c0_i32, %arg1 : i32, i32, i32
  }
  func.func @transform_1(%arg0: i32, %arg1: i32) -> (i32, i32) {
    %c0_i32 = arith.constant 0 : i32
    %c0_i32_0 = arith.constant 0 : i32
    %c0_i32_1 = arith.constant 0 : i32
    return %c0_i32, %c0_i32_0 : i32, i32
  }
  func.func @transform_2(%arg0: i32, %arg1: i32) -> (i32, i32) {
    %c0_i32 = arith.constant 0 : i32
    %c0_i32_0 = arith.constant 0 : i32
    %c0_i32_1 = arith.constant 0 : i32
    return %c0_i32, %c0_i32_0 : i32, i32
  }
  func.func @transform_3(%arg0: i32, %arg1: i32) -> (i32, i32, i32) {
    %c0_i32 = arith.constant 0 : i32
    %c0_i32_0 = arith.constant 0 : i32
    %c0_i32_1 = arith.constant 0 : i32
    return %arg0, %c0_i32, %c0_i32_0 : i32, i32, i32
  }
}

</mosaic_0001>

<llo_original>
// kernel: tpu_custom_call.1
$region0: #{tpu_custom_call.1}
  #allocation0 [shape = 'u32[]', space=smem, size = 0x4, offset = 0x4, fixed_abs, tag = 'smem constant byte address 0x4 - core index']
  #allocation1 [shape = 'u32[144,128]{1,0:T(1,128)}', space=vmem, size = 0x12000, scoped, tag = 'internal scratch']
  #allocation2 [shape = 'f32[1,8]{1,0:T(1,128)}', space=vmem, size = 0x200, scoped, tag = 'scratch operand']
  #allocation3 [shape = 'f32[1,8]{1,0:T(1,128)}', space=vmem, size = 0x200, scoped, tag = 'scratch operand']
  %s0 = inlined_call_operand.hbm [shape: f32[2,8,256], index: 0, kind: input, shape index: {}]
  %s1 = inlined_call_operand.vmem [shape: f32[8,2], index: 1, kind: input, shape index: {}]
  %s2 = inlined_call_operand.vmem [shape: f32[2,8], index: 2, kind: input, shape index: {}]
  %s3 = inlined_call_operand.hbm [shape: f32[2,1,8], index: 3, kind: output, shape index: {}]
  %s4 = sld [smem:[#allocation0]]
  $region57: #{tpu_custom_call.1} parent=0
    _
  %s6 = ssub.s32 1, %s4
  %s7 = scalar_select 0, %s6, %s4
  $region1: #{tpu_custom_call.1} parent=0
    #allocation4 [shape = 'u8[16384]{0}', space=vmem, size = 0x4000, scoped, tag = 'input window, operand 0']
    #allocation5 [shape = 's32[2]{0}', space=sflag, size = 0x8, scoped, tag = 'scoped memory for tpu_custom_call.1']
    #allocation6 [shape = 's32[2]{0}', space=sflag, size = 0x8, scoped, tag = 'scoped memory for tpu_custom_call.1']
    #allocation7 [shape = 'u8[1024]{0}', space=vmem, size = 0x400, scoped, tag = 'output window, operand 0']
    %8 = vsyncpa [#allocation5], 0
    %s9 = scalar_lea.sflag [#allocation5], 1
    %10 = vsyncpa %s9, 0
    %11 = vsyncpa [#allocation6], 0
    %s12 = scalar_lea.sflag [#allocation6], 1
    %13 = vsyncpa %s12, 0
    loop: start=0, step=1, limit=4
    $region2: #{tpu_custom_call.1} parent=1 // loop_pre_header
      _
    $region3: #{tpu_custom_call.1} parent=1 // loop_header
      %s15 = sphi 0, %s19
      %p16 = scmp.ge.s32.totalorder %s15, 4
      %s22 = sphi 0, %s34
      %s23 = sphi 0, %s30
      %s24 = sphi 0, %s22
      %s25 = sphi 0, %s23
      %s26 = sphi 0, %s24
      %s27 = sphi 0, %s25
      %s39 = sphi 0, %s41
      %s42 = sphi 0, %s39
      %s43 = sphi 0, %s42
      %s59 = sphi 0, %s43
      %s63 = sphi 0, %s63
      %s65 = sphi 0, %s63
      %s66 = sphi 0, %s65
      %s80 = sphi 0, %s66
      %s84 = sphi 0, %s84
      %s86 = sphi 0, %s84
      %s87 = sphi 0, %s86
      %s101 = sphi 0, %s87
      %s107 = sphi 0, %s109
      %s110 = sphi 0, %s107
      %s111 = sphi 0, %s110
      %s127 = sphi 0, %s111
    $region4: #{tpu_custom_call.1} parent=1 // loop_header_branch
      %18 = sbr.rel (%p16) target = $region8
    $region5: #{tpu_custom_call.1} parent=1 // loop_body
      %s20 = ssub.s32 %s15, 1
      %s21 = ssub.s32 %s15, 2
      %s28 = sadd.s32 1, %s23
      %p29 = scmp.ge.s32.totalorder %s28, 1
      %s30 = scalar_select %p29, 0, %s28
      %s31 = sadd.s32 1, %s22
      %s32 = scalar_select %p29, %s31, %s22
      %p33 = scmp.ge.s32.totalorder %s32, 2
      %s34 = scalar_select %p33, 0, %s32
      %s35 = ssub.s32 %s22, %s34
      %s36 = ssub.s32 %s23, %s30
      %s37 = sor.u32 %s35, %s36
      %p38 = scmp.eq.s32.totalorder %s37, 0
      %s40 = sadd.s32 %s39, 1
      %s41 = scalar_select %p38, %s39, %s40
      %p44 = pneg %p38
      %p45 = scmp.eq.s32.totalorder %s15, 1
      %p46 = por %p44, %p45
      %p47 = scmp.ne.s32.totalorder %s39, %s42
      %p48 = scmp.eq.s32.totalorder %s15, 0
      %p49 = por %p47, %p48
      %p50 = scmp.ne.s32.totalorder %s39, %s42
      %p51 = scmp.eq.s32.totalorder %s20, 1
      %p52 = por %p50, %p51
      %p53 = scmp.ne.s32.totalorder %s42, %s43
      %p54 = scmp.eq.s32.totalorder %s20, 0
      %p55 = por %p53, %p54
      %p56 = scmp.ne.s32.totalorder %s42, %s43
      %p57 = scmp.eq.s32.totalorder %s21, 1
      %p58 = por %p56, %p57
      %p60 = scmp.ne.s32.totalorder %s43, %s59
      %p61 = scmp.eq.s32.totalorder %s21, 0
      %p62 = por %p60, %p61
      %s64 = sadd.s32 %s63, 1
      %p67 = scmp.eq.s32.totalorder %s15, 1
      %p68 = scmp.ne.s32.totalorder %s63, %s65
      %p69 = scmp.eq.s32.totalorder %s15, 0
      %p70 = por %p68, %p69
      %p71 = scmp.ne.s32.totalorder %s63, %s65
      %p72 = scmp.eq.s32.totalorder %s20, 1
      %p73 = por %p71, %p72
      %p74 = scmp.ne.s32.totalorder %s65, %s66
      %p75 = scmp.eq.s32.totalorder %s20, 0
      %p76 = por %p74, %p75
      %p77 = scmp.ne.s32.totalorder %s65, %s66
      %p78 = scmp.eq.s32.totalorder %s21, 1
      %p79 = por %p77, %p78
      %p81 = scmp.ne.s32.totalorder %s66, %s80
      %p82 = scmp.eq.s32.totalorder %s21, 0
      %p83 = por %p81, %p82
      %s85 = sadd.s32 %s84, 1
      %p88 = scmp.eq.s32.totalorder %s15, 1
      %p89 = scmp.ne.s32.totalorder %s84, %s86
      %p90 = scmp.eq.s32.totalorder %s15, 0
      %p91 = por %p89, %p90
      %p92 = scmp.ne.s32.totalorder %s84, %s86
      %p93 = scmp.eq.s32.totalorder %s20, 1
      %p94 = por %p92, %p93
      %p95 = scmp.ne.s32.totalorder %s86, %s87
      %p96 = scmp.eq.s32.totalorder %s20, 0
      %p97 = por %p95, %p96
      %p98 = scmp.ne.s32.totalorder %s86, %s87
      %p99 = scmp.eq.s32.totalorder %s21, 1
      %p100 = por %p98, %p99
      %p102 = scmp.ne.s32.totalorder %s87, %s101
      %p103 = scmp.eq.s32.totalorder %s21, 0
      %p104 = por %p102, %p103
      %s105 = ssub.s32 %s22, %s34
      %p106 = scmp.eq.s32.totalorder %s105, 0
      %s108 = sadd.s32 %s107, 1
      %s109 = scalar_select %p106, %s107, %s108
      %p112 = pneg %p106
      %p113 = scmp.eq.s32.totalorder %s15, 1
      %p114 = por %p112, %p113
      %p115 = scmp.ne.s32.totalorder %s107, %s110
      %p116 = scmp.eq.s32.totalorder %s15, 0
      %p117 = por %p115, %p116
      %p118 = scmp.ne.s32.totalorder %s107, %s110
      %p119 = scmp.eq.s32.totalorder %s20, 1
      %p120 = por %p118, %p119
      %p121 = scmp.ne.s32.totalorder %s110, %s111
      %p122 = scmp.eq.s32.totalorder %s20, 0
      %p123 = por %p121, %p122
      %p124 = scmp.ne.s32.totalorder %s110, %s111
      %p125 = scmp.eq.s32.totalorder %s21, 1
      %p126 = por %p124, %p125
      %p128 = scmp.ne.s32.totalorder %s111, %s127
      %p129 = scmp.eq.s32.totalorder %s21, 0
      %p130 = por %p128, %p129
      %p131 = scmp.le.s32.totalorder 1, %s15
      %p132 = scmp.lt.s32.totalorder %s15, 3
      %p133 = pnand %p131, %p132
      %p134 = pneg %p133
      // Predicated region
      $region9: #{tpu_custom_call.1} parent=5 // pred_check
        _
      $region10: #{tpu_custom_call.1} parent=5 // pred_check_branch
        %136 = sbr.rel (%p133) target = $region12
      $region11: #{tpu_custom_call.1} parent=5 // pred_region
        %s137 = ssub.s32 %s15, 1
        // Predicated region
        $region13: #{tpu_custom_call.1} parent=11 // pred_check
          %p138 = pneg %p76
        $region14: #{tpu_custom_call.1} parent=11 // pred_check_branch
          %140 = sbr.rel (%p138) target = $region16
        $region15: #{tpu_custom_call.1} parent=11 // pred_region
          _
        $region16: #{tpu_custom_call.1} parent=11 // pred_fallthru
          _
        // Predicated region
        $region17: #{tpu_custom_call.1} parent=11 // pred_check
          %p141 = pneg %p97
        $region18: #{tpu_custom_call.1} parent=11 // pred_check_branch
          %143 = sbr.rel (%p141) target = $region20
        $region19: #{tpu_custom_call.1} parent=11 // pred_region
          _
        $region20: #{tpu_custom_call.1} parent=11 // pred_fallthru
          _
      $region12: #{tpu_custom_call.1} parent=5 // pred_fallthru
        _
      %p144 = scmp.lt.s32.totalorder %s15, 2
      // Predicated region
      $region21: #{tpu_custom_call.1} parent=5 // pred_check
        %p145 = pneg %p144
      $region22: #{tpu_custom_call.1} parent=5 // pred_check_branch
        %147 = sbr.rel (%p145) target = $region24
      $region23: #{tpu_custom_call.1} parent=5 // pred_region
        // Predicated region
        $region25: #{tpu_custom_call.1} parent=23 // pred_check
          %p148 = pneg %p49
        $region26: #{tpu_custom_call.1} parent=23 // pred_check_branch
          %150 = sbr.rel (%p148) target = $region28
        $region27: #{tpu_custom_call.1} parent=23 // pred_region
          %s151 = sand.u32 %s39, 1
          %s152 = scalar_lea.sflag [#allocation5], %s151
          %s153 = sand.u32 %s39, 1
          %s154 = smul.addr %s153, 16
          %s155 = scalar_lea.vmem [#allocation4], %s154
          %s156 = smul.u32 2, %s23
          %s158 = ssub.s32 256, 256
          %159 = vsyncadd %s152, %s158
          %s160 = smul.addr %s22, 2
          %s161 = sadd.s32 %s156, %s160
          %s162 = smul.addr %s161, 128
          %s163 = scalar_lea.hbm %s0, %s162
          %s165 = sshll.u32 %s155, 4
          %s166 = int_to_ptr.vmem [resolvable:$true] %s165
          %168 = dma.hbm_to_vmem [thread:$0]  %s163, 256, %s166, %s152
        $region28: #{tpu_custom_call.1} parent=23 // pred_fallthru
          _
      $region24: #{tpu_custom_call.1} parent=5 // pred_fallthru
        _
      %p169 = scmp.le.s32.totalorder 1, %s15
      %p170 = scmp.lt.s32.totalorder %s15, 3
      %p171 = pnand %p169, %p170
      %p172 = pneg %p171
      // Predicated region
      $region29: #{tpu_custom_call.1} parent=5 // pred_check
        _
      $region30: #{tpu_custom_call.1} parent=5 // pred_check_branch
        %174 = sbr.rel (%p171) target = $region32
      $region31: #{tpu_custom_call.1} parent=5 // pred_region
        %s175 = ssub.s32 %s15, 1
        %s176 = sand.u32 %s42, 1
        %s177 = scalar_lea.sflag [#allocation5], %s176
        %s178 = sand.u32 %s42, 1
        %s179 = smul.addr %s178, 16
        %s180 = scalar_lea.vmem [#allocation4], %s179
        // Predicated region
        $region33: #{tpu_custom_call.1} parent=31 // pred_check
          %p181 = pneg %p55
        $region34: #{tpu_custom_call.1} parent=31 // pred_check_branch
          %183 = sbr.rel (%p181) target = $region36
        $region35: #{tpu_custom_call.1} parent=31 // pred_region
          %184 = dma.done %s177, 256
        $region36: #{tpu_custom_call.1} parent=31 // pred_fallthru
          _
        %s185 = sand.u32 %s42, 1
        %s186 = scalar_lea.sflag [#allocation5], %s185
        %s187 = sand.u32 %s42, 1
        %s188 = smul.addr %s187, 16
        %s189 = scalar_lea.vmem [#allocation4], %s188
        %p190 = pneg %p55
        %p191 = pneg %p52
        %p192 = pneg %p76
        %p193 = pneg %p73
        %p194 = pneg %p97
        %p195 = pneg %p94
        %p196 = pneg %p123
        %p197 = pneg %p120
        %s198 = sand.u32 %s110, 1
        %s199 = scalar_lea.sflag [#allocation6], %s198
        %s200 = sand.u32 %s110, 1
        %s201 = scalar_lea.vmem [#allocation7], %s200
        %s202 = smul.u32 2, %s25
        %v203 = vld [vmem:[%s180] sm:$0xff]
        %v204 = vld [vmem:[%s180 + $0x8] sm:$0xff]
        %p205 = scmp.eq.s32.totalorder %s25, 0
        // Predicated region
        $region37: #{tpu_custom_call.1} parent=31 // pred_check
          %p206 = pneg %p205
        $region38: #{tpu_custom_call.1} parent=31 // pred_check_branch
          %208 = sbr.rel (%p206) target = $region40
        $region39: #{tpu_custom_call.1} parent=31 // pred_region
          %vm209 = vcmask 57344
          %210 = vst.msk [vmem:[#allocation2] sm:$0x1] %vm209, 0.0
          %211 = vst.msk [vmem:[#allocation3] sm:$0x1] %vm209, -inf
        $region40: #{tpu_custom_call.1} parent=31 // pred_fallthru
          _
        %v212 = vld [vmem:[#allocation2] sm:$0x1]
        %v213 = vadd.f32 %v203, %v204
        %214 = vadd.xlane.f32.xlu0 %v213
        %v215 = vpop.xlane.xlu0 %214
        %v217 = vlaneseq
        %v218 = vshrl.u32 %v217, 7
        %v219 = vsub.s32 0, %v218
        %v220 = vrot.slane %v215, %v219
        %v221 = vlaneseq
        %v222 = vshrl.u32 %v221, 7
        %v223 = vsub.s32 1, %v222
        %v224 = vrot.slane %v215, %v223
        %v225 = vlaneseq
        %v226 = vshrl.u32 %v225, 7
        %v227 = vsub.s32 2, %v226
        %v228 = vrot.slane %v215, %v227
        %v229 = vlaneseq
        %v230 = vshrl.u32 %v229, 7
        %v231 = vsub.s32 3, %v230
        %v232 = vrot.slane %v215, %v231
        %v233 = vlaneseq
        %v234 = vshrl.u32 %v233, 7
        %v235 = vsub.s32 4, %v234
        %v236 = vrot.slane %v215, %v235
        %v237 = vlaneseq
        %v238 = vshrl.u32 %v237, 7
        %v239 = vsub.s32 5, %v238
        %v240 = vrot.slane %v215, %v239
        %v241 = vlaneseq
        %v242 = vshrl.u32 %v241, 7
        %v243 = vsub.s32 6, %v242
        %v244 = vrot.slane %v215, %v243
        %v245 = vlaneseq
        %v246 = vshrl.u32 %v245, 7
        %v247 = vsub.s32 7, %v246
        %v248 = vrot.slane %v215, %v247
        %v249 = vcombine.low %v220, %v224
        %v250 = vcombine.low %v228, %v232
        %v251 = vcombine.low %v236, %v240
        %v252 = vcombine.low %v244, %v248
        %v254 = vunpack.c.l.s4 1966171168
        %v255 = vunpack.c.0.s8 %v254
        %v256 = vlaneseq
        %v257 = vshrl.u32 %v256, 7
        %v258 = vsub.s32 %v255, %v257
        %v259 = vrot.slane %v249, %v258
        %v261 = vunpack.c.l.s4 1966171168
        %v262 = vunpack.c.0.s8 %v261
        %v263 = vlaneseq
        %v264 = vshrl.u32 %v263, 7
        %v265 = vsub.s32 %v262, %v264
        %v266 = vrot.slane %v250, %v265
        %v268 = vunpack.c.l.s4 1966171168
        %v269 = vunpack.c.0.s8 %v268
        %v270 = vlaneseq
        %v271 = vshrl.u32 %v270, 7
        %v272 = vsub.s32 %v269, %v271
        %v273 = vrot.slane %v251, %v272
        %v275 = vunpack.c.l.s4 1966171168
        %v276 = vunpack.c.0.s8 %v275
        %v277 = vlaneseq
        %v278 = vshrl.u32 %v277, 7
        %v279 = vsub.s32 %v276, %v278
        %v280 = vrot.slane %v252, %v279
        %v281 = vcombine.low %v259, %v266
        %v282 = vcombine.low %v273, %v280
        %v284 = vunpack.c.l.s4 1966171168
        %v285 = vunpack.c.0.s8 %v284
        %v286 = vlaneseq
        %v287 = vshrl.u32 %v286, 7
        %v288 = vsub.s32 %v285, %v287
        %v289 = vrot.slane %v281, %v288
        %v291 = vunpack.c.l.s4 1966171168
        %v292 = vunpack.c.0.s8 %v291
        %v293 = vlaneseq
        %v294 = vshrl.u32 %v293, 7
        %v295 = vsub.s32 %v292, %v294
        %v296 = vrot.slane %v282, %v295
        %v297 = vcombine.low %v289, %v296
        %298 = vset.pattern.permute.xlu0 0
        %299 = vperm.xlu0 %298, %v297
        %v300 = vpop.permute.xlu0 %299
        %v301 = vlaneseq
        %v302 = vand.u32 %v301, 127
        %v303 = vlaneseq
        %v304 = vshrl.u32 %v303, 7
        %v305 = vsub.s32 %v302, %v304
        %v306 = vrot.slane %v300, %v305
        %v308 = vunpack.c.l.s4 1966171168
        %v309 = vunpack.c.0.s8 %v308
        %v310 = vlaneseq
        %v311 = vshrl.u32 %v310, 7
        %v312 = vsub.s32 %v309, %v311
        %v313 = vrot.slane %v306, %v312
        %v315 = vunpack.c.l.s4 1966171168
        %v316 = vunpack.c.0.s8 %v315
        %v317 = vlaneseq
        %v318 = vshrl.u32 %v317, 7
        %v319 = vsub.s32 %v316, %v318
        %v320 = vrot.slane %v313, %v319
        %v322 = vadd.f32 %v212, %v320
        %vm323 = vcmask 57344
        %324 = vst.msk [vmem:[#allocation2] sm:$0x1] %vm323, %v322
        %v325 = vld [vmem:[#allocation3] sm:$0x1]
        %v326 = vmax.f32 %v203, %v204
        %327 = vmax.xlane.f32.xlu0 %v326
        %v328 = vpop.xlane.xlu0 %327
        %v330 = vlaneseq
        %v331 = vshrl.u32 %v330, 7
        %v332 = vsub.s32 0, %v331
        %v333 = vrot.slane %v328, %v332
        %v334 = vlaneseq
        %v335 = vshrl.u32 %v334, 7
        %v336 = vsub.s32 1, %v335
        %v337 = vrot.slane %v328, %v336
        %v338 = vlaneseq
        %v339 = vshrl.u32 %v338, 7
        %v340 = vsub.s32 2, %v339
        %v341 = vrot.slane %v328, %v340
        %v342 = vlaneseq
        %v343 = vshrl.u32 %v342, 7
        %v344 = vsub.s32 3, %v343
        %v345 = vrot.slane %v328, %v344
        %v346 = vlaneseq
        %v347 = vshrl.u32 %v346, 7
        %v348 = vsub.s32 4, %v347
        %v349 = vrot.slane %v328, %v348
        %v350 = vlaneseq
        %v351 = vshrl.u32 %v350, 7
        %v352 = vsub.s32 5, %v351
        %v353 = vrot.slane %v328, %v352
        %v354 = vlaneseq
        %v355 = vshrl.u32 %v354, 7
        %v356 = vsub.s32 6, %v355
        %v357 = vrot.slane %v328, %v356
        %v358 = vlaneseq
        %v359 = vshrl.u32 %v358, 7
        %v360 = vsub.s32 7, %v359
        %v361 = vrot.slane %v328, %v360
        %v362 = vcombine.low %v333, %v337
        %v363 = vcombine.low %v341, %v345
        %v364 = vcombine.low %v349, %v353
        %v365 = vcombine.low %v357, %v361
        %v367 = vunpack.c.l.s4 1966171168
        %v368 = vunpack.c.0.s8 %v367
        %v369 = vlaneseq
        %v370 = vshrl.u32 %v369, 7
        %v371 = vsub.s32 %v368, %v370
        %v372 = vrot.slane %v362, %v371
        %v374 = vunpack.c.l.s4 1966171168
        %v375 = vunpack.c.0.s8 %v374
        %v376 = vlaneseq
        %v377 = vshrl.u32 %v376, 7
        %v378 = vsub.s32 %v375, %v377
        %v379 = vrot.slane %v363, %v378
        %v381 = vunpack.c.l.s4 1966171168
        %v382 = vunpack.c.0.s8 %v381
        %v383 = vlaneseq
        %v384 = vshrl.u32 %v383, 7
        %v385 = vsub.s32 %v382, %v384
        %v386 = vrot.slane %v364, %v385
        %v388 = vunpack.c.l.s4 1966171168
        %v389 = vunpack.c.0.s8 %v388
        %v390 = vlaneseq
        %v391 = vshrl.u32 %v390, 7
        %v392 = vsub.s32 %v389, %v391
        %v393 = vrot.slane %v365, %v392
        %v394 = vcombine.low %v372, %v379
        %v395 = vcombine.low %v386, %v393
        %v397 = vunpack.c.l.s4 1966171168
        %v398 = vunpack.c.0.s8 %v397
        %v399 = vlaneseq
        %v400 = vshrl.u32 %v399, 7
        %v401 = vsub.s32 %v398, %v400
        %v402 = vrot.slane %v394, %v401
        %v404 = vunpack.c.l.s4 1966171168
        %v405 = vunpack.c.0.s8 %v404
        %v406 = vlaneseq
        %v407 = vshrl.u32 %v406, 7
        %v408 = vsub.s32 %v405, %v407
        %v409 = vrot.slane %v395, %v408
        %v410 = vcombine.low %v402, %v409
        %411 = vset.pattern.permute.xlu0 0
        %412 = vperm.xlu0 %411, %v410
        %v413 = vpop.permute.xlu0 %412
        %v414 = vlaneseq
        %v415 = vshrl.u32 %v414, 7
        %v416 = vsub.s32 %v302, %v415
        %v417 = vrot.slane %v413, %v416
        %v419 = vunpack.c.l.s4 1966171168
        %v420 = vunpack.c.0.s8 %v419
        %v421 = vlaneseq
        %v422 = vshrl.u32 %v421, 7
        %v423 = vsub.s32 %v420, %v422
        %v424 = vrot.slane %v417, %v423
        %v426 = vunpack.c.l.s4 1966171168
        %v427 = vunpack.c.0.s8 %v426
        %v428 = vlaneseq
        %v429 = vshrl.u32 %v428, 7
        %v430 = vsub.s32 %v427, %v429
        %v431 = vrot.slane %v424, %v430
        %v433 = vmax.f32 %v325, %v431
        %434 = vst.msk [vmem:[#allocation3] sm:$0x1] %vm323, %v433
        // Predicated region
        $region41: #{tpu_custom_call.1} parent=31 // pred_check
          %p435 = pneg %p205
        $region42: #{tpu_custom_call.1} parent=31 // pred_check_branch
          %437 = sbr.rel (%p435) target = $region44
        $region43: #{tpu_custom_call.1} parent=31 // pred_region
          %v438 = vld [vmem:[#allocation2] sm:$0x1]
          %v439 = vmul.f32 %v438, 0.00390625
          %v440 = vld [vmem:[#allocation3] sm:$0x1]
          %v442 = vlaneseq
          %v443 = vshrl.u32 %v442, 7
          %v444 = vsub.s32 0, %v443
          %v445 = vrot.slane %v440, %v444
          %vm447 = vcmask 1040384
          %v448 = vsel %vm447, %v439, %v445
          %v449 = vld [vmem:[%s1] sm:$0xff]
          %vm450 = vcmask 64512
          %v452 = vsel %vm450, %v448, 0
          %454 = vmatprep.subr.mxu0 0.0
          %455 = vmatpush1.msra.mxu0 %v449
          %456 = vmatprep.subr.mxu0 0.0
          %457 = vmatpush1.msra.mxu0 0.0
          %458 = vmatprep.subr.mxu0 0.0
          %459 = vmatpush1.msra.mxu0 0.0
          %460 = vmatprep.subr.mxu0 0.0
          %461 = vmatpush1.msra.mxu0 0.0
          %462 = vmatprep.subr.mxu0 0.0
          %463 = vmatpush1.msra.mxu0 0.0
          %464 = vmatprep.subr.mxu0 0.0
          %465 = vmatpush1.msra.mxu0 0.0
          %466 = vmatprep.subr.mxu0 0.0
          %467 = vmatpush1.msra.mxu0 0.0
          %468 = vmatprep.subr.mxu0 0.0
          %469 = vmatpush1.msra.mxu0 0.0
          %470 = vmatprep.subr.mxu0 0.0
          %471 = vmatpush1.msra.mxu0 0.0
          %472 = vmatprep.subr.mxu0 0.0
          %473 = vmatpush1.msra.mxu0 0.0
          %474 = vmatprep.subr.mxu0 0.0
          %475 = vmatpush1.msra.mxu0 0.0
          %476 = vmatprep.subr.mxu0 0.0
          %477 = vmatpush1.msra.mxu0 0.0
          %478 = vmatprep.subr.mxu0 0.0
          %479 = vmatpush1.msra.mxu0 0.0
          %480 = vmatprep.subr.mxu0 0.0
          %481 = vmatpush1.msra.mxu0 0.0
          %482 = vmatprep.subr.mxu0 0.0
          %483 = vmatpush1.msra.mxu0 0.0
          %484 = vmatprep.subr.mxu0 0.0
          %485 = vmatpush1.msra.mxu0 0.0
          %486 = vmatprep.subr.mxu0 0.0
          %487 = vmatpush1.msra.mxu0 0.0
          %488 = vmatprep.subr.mxu0 0.0
          %489 = vmatpush1.msra.mxu0 0.0
          %490 = vmatprep.subr.mxu0 0.0
          %491 = vmatpush1.msra.mxu0 0.0
          %492 = vmatprep.subr.mxu0 0.0
          %493 = vmatpush1.msra.mxu0 0.0
          %494 = vmatprep.subr.mxu0 0.0
          %495 = vmatpush1.msra.mxu0 0.0
          %496 = vmatprep.subr.mxu0 0.0
          %497 = vmatpush1.msra.mxu0 0.0
          %498 = vmatprep.subr.mxu0 0.0
          %499 = vmatpush1.msra.mxu0 0.0
          %500 = vmatprep.subr.mxu0 0.0
          %501 = vmatpush1.msra.mxu0 0.0
          %502 = vmatprep.subr.mxu0 0.0
          %503 = vmatpush1.msra.mxu0 0.0
          %504 = vmatprep.subr.mxu0 0.0
          %505 = vmatpush1.msra.mxu0 0.0
          %506 = vmatprep.subr.mxu0 0.0
          %507 = vmatpush1.msra.mxu0 0.0
          %508 = vmatprep.subr.mxu0 0.0
          %509 = vmatpush1.msra.mxu0 0.0
          %510 = vmatprep.subr.mxu0 0.0
          %511 = vmatpush1.msra.mxu0 0.0
          %512 = vmatprep.subr.mxu0 0.0
          %513 = vmatpush1.msra.mxu0 0.0
          %514 = vmatprep.subr.mxu0 0.0
          %515 = vmatpush1.msra.mxu0 0.0
          %516 = vmatprep.subr.mxu0 0.0
          %517 = vmatpush1.msra.mxu0 0.0
          %518 = vmatprep.mubr.f32.mxu0 0.0
          %519 = vmatmul.mubr.f32.gmra.mrb[0].mxu0 %v452
          %v520 = vpop.f32.mrb[0].mxu0
          %v521 = vadd.f32 0.0, %v520
          %v522 = vpop.f32.mrb[0].mxu0
          %523 = vdwg.mxu0
          %v524 = vmax.f32 %v521, 0.0
          %v525 = vld [vmem:[%s2] sm:$0x3]
          %vm526 = vcmask 15360
          %v528 = vsel %vm526, %v524, 0
          %vm530 = vcmask 1041408
          %v532 = vsel %vm530, %v525, 0
          %534 = vmatprep.subr.mxu0 0.0
          %535 = vmatpush1.msra.mxu0 %v532
          %536 = vmatprep.subr.mxu0 0.0
          %537 = vmatpush1.msra.mxu0 0.0
          %538 = vmatprep.subr.mxu0 0.0
          %539 = vmatpush1.msra.mxu0 0.0
          %540 = vmatprep.subr.mxu0 0.0
          %541 = vmatpush1.msra.mxu0 0.0
          %542 = vmatprep.subr.mxu0 0.0
          %543 = vmatpush1.msra.mxu0 0.0
          %544 = vmatprep.subr.mxu0 0.0
          %545 = vmatpush1.msra.mxu0 0.0
          %546 = vmatprep.subr.mxu0 0.0
          %547 = vmatpush1.msra.mxu0 0.0
          %548 = vmatprep.subr.mxu0 0.0
          %549 = vmatpush1.msra.mxu0 0.0
          %550 = vmatprep.subr.mxu0 0.0
          %551 = vmatpush1.msra.mxu0 0.0
          %552 = vmatprep.subr.mxu0 0.0
          %553 = vmatpush1.msra.mxu0 0.0
          %554 = vmatprep.subr.mxu0 0.0
          %555 = vmatpush1.msra.mxu0 0.0
          %556 = vmatprep.subr.mxu0 0.0
          %557 = vmatpush1.msra.mxu0 0.0
          %558 = vmatprep.subr.mxu0 0.0
          %559 = vmatpush1.msra.mxu0 0.0
          %560 = vmatprep.subr.mxu0 0.0
          %561 = vmatpush1.msra.mxu0 0.0
          %562 = vmatprep.subr.mxu0 0.0
          %563 = vmatpush1.msra.mxu0 0.0
          %564 = vmatprep.subr.mxu0 0.0
          %565 = vmatpush1.msra.mxu0 0.0
          %566 = vmatprep.subr.mxu0 0.0
          %567 = vmatpush1.msra.mxu0 0.0
          %568 = vmatprep.subr.mxu0 0.0
          %569 = vmatpush1.msra.mxu0 0.0
          %570 = vmatprep.subr.mxu0 0.0
          %571 = vmatpush1.msra.mxu0 0.0
          %572 = vmatprep.subr.mxu0 0.0
          %573 = vmatpush1.msra.mxu0 0.0
          %574 = vmatprep.subr.mxu0 0.0
          %575 = vmatpush1.msra.mxu0 0.0
          %576 = vmatprep.subr.mxu0 0.0
          %577 = vmatpush1.msra.mxu0 0.0
          %578 = vmatprep.subr.mxu0 0.0
          %579 = vmatpush1.msra.mxu0 0.0
          %580 = vmatprep.subr.mxu0 0.0
          %581 = vmatpush1.msra.mxu0 0.0
          %582 = vmatprep.subr.mxu0 0.0
          %583 = vmatpush1.msra.mxu0 0.0
          %584 = vmatprep.subr.mxu0 0.0
          %585 = vmatpush1.msra.mxu0 0.0
          %586 = vmatprep.subr.mxu0 0.0
          %587 = vmatpush1.msra.mxu0 0.0
          %588 = vmatprep.subr.mxu0 0.0
          %589 = vmatpush1.msra.mxu0 0.0
          %590 = vmatprep.subr.mxu0 0.0
          %591 = vmatpush1.msra.mxu0 0.0
          %592 = vmatprep.subr.mxu0 0.0
          %593 = vmatpush1.msra.mxu0 0.0
          %594 = vmatprep.subr.mxu0 0.0
          %595 = vmatpush1.msra.mxu0 0.0
          %596 = vmatprep.subr.mxu0 0.0
          %597 = vmatpush1.msra.mxu0 0.0
          %598 = vmatprep.mubr.f32.mxu0 0.0
          %599 = vmatmul.mubr.f32.gmra.mrb[0].mxu0 %v528
          %v600 = vpop.f32.mrb[0].mxu0
          %v601 = vadd.f32 0.0, %v600
          %v602 = vpop.f32.mrb[0].mxu0
          %603 = vdwg.mxu0
          %v605 = vrot.slane %v601, 1
          %v607 = vadd.f32 %v601, %v605
          %v608 = vxor.u32 %v607, 2147483648
          %v609 = vmul.f32 %v608, 1.442695
          %v610 = vpow.pop %v609
          %v611 = vadd.f32 %v610, 1.0
          %v612 = vrcp.pop %v611
          %v613 = vmul.f32 1.0, %v612
          %614 = vst.msk [vmem:[%s201] sm:$0x1] %vm323, %v613
        $region44: #{tpu_custom_call.1} parent=31 // pred_fallthru
          _
        %s615 = sand.u32 %s110, 1
        %s616 = scalar_lea.sflag [#allocation6], %s615
        %s617 = sand.u32 %s110, 1
        %s618 = scalar_lea.vmem [#allocation7], %s617
        // Predicated region
        $region45: #{tpu_custom_call.1} parent=31 // pred_check
          %p619 = pneg %p120
        $region46: #{tpu_custom_call.1} parent=31 // pred_check_branch
          %621 = sbr.rel (%p619) target = $region48
        $region47: #{tpu_custom_call.1} parent=31 // pred_region
          %s623 = ssub.s32 16, 16
          %624 = vsyncadd %s616, %s623
          %s625 = smul.addr %s24, 16
          %s626 = scalar_lea.hbm %s3, %s625
          %s628 = sshll.u32 %s618, 4
          %s629 = int_to_ptr.vmem [resolvable:$true] %s628
          %631 = dma.vmem_to_hbm [thread:$0]  %s629, 16, %s626, %s616
        $region48: #{tpu_custom_call.1} parent=31 // pred_fallthru
          _
      $region32: #{tpu_custom_call.1} parent=5 // pred_fallthru
        _
      %p632 = scmp.le.s32.totalorder 2, %s15
      // Predicated region
      $region49: #{tpu_custom_call.1} parent=5 // pred_check
        %p633 = pneg %p632
      $region50: #{tpu_custom_call.1} parent=5 // pred_check_branch
        %635 = sbr.rel (%p633) target = $region52
      $region51: #{tpu_custom_call.1} parent=5 // pred_region
        %s636 = ssub.s32 %s15, 2
        // Predicated region
        $region53: #{tpu_custom_call.1} parent=51 // pred_check
          %p637 = pneg %p126
        $region54: #{tpu_custom_call.1} parent=51 // pred_check_branch
          %639 = sbr.rel (%p637) target = $region56
        $region55: #{tpu_custom_call.1} parent=51 // pred_region
          %s640 = sand.u32 %s111, 1
          %s641 = scalar_lea.sflag [#allocation6], %s640
          %s642 = sand.u32 %s111, 1
          %s643 = scalar_lea.vmem [#allocation7], %s642
          %644 = dma.done %s641, 16
        $region56: #{tpu_custom_call.1} parent=51 // pred_fallthru
          _
      $region52: #{tpu_custom_call.1} parent=5 // pred_fallthru
        _
    $region6: #{tpu_custom_call.1} parent=1 // loop_footer
      %s19 = sadd.s32 1, %s15
    $region7: #{tpu_custom_call.1} parent=1 // loop_footer_branch
      %14 = sbr.rel target = $region3
    $region8: #{tpu_custom_call.1} parent=1 // loop_exit
      _
    %645 = vsyncpa [#allocation5], 1
    %s646 = scalar_lea.sflag [#allocation5], 1
    %647 = vsyncpa %s646, 1
    %648 = vsyncpa [#allocation6], 1
    %s649 = scalar_lea.sflag [#allocation6], 1
    %650 = vsyncpa %s649, 1

</llo_original>
